<compile_context>
chip_gen: v7x
topology: tpu7x:2x2x1
jax: 0.10.0
libtpu: 0.0.40
codegen_flags: <defaults>
</compile_context>

<pallas_src>
import functools

import jax
import jax.numpy as jnp
from jax import lax
from jax.experimental import pallas as pl
from jax.experimental.pallas import tpu as pltpu

CLASS_DIM = 2     # class_dim in DsFunction1
PROTO_DIM = 10    # prototype_dim in DsFunction1


def _ds1_kernel(params_ref, x_ref, out_ref, *, chunk_rows):
    """Evidential masses + Dempster's rule, pixels on full (rows, 128) vregs.

    params_ref : (P*Cin + P*C + P + P,) SMEM  [W | U | 0.5*gamma^2 | log(alphap)]
    x_ref      : (Cin, R, 128)          VMEM  pixel features
    out_ref    : (C+1, R, 128)          VMEM  normalized masses (c0, c1, unc.)
    """
    cin = x_ref.shape[0]
    rows = x_ref.shape[1]
    num_chunks = rows // chunk_rows

    # Hoist the (tiny) scalar parameters out of the pixel loop.
    w = [[params_ref[k * cin + c] for c in range(cin)] for k in range(PROTO_DIM)]
    off = PROTO_DIM * cin
    u = [[params_ref[off + k * CLASS_DIM + j] for j in range(CLASS_DIM)]
         for k in range(PROTO_DIM)]
    off += PROTO_DIM * CLASS_DIM
    g2h = [params_ref[off + k] for k in range(PROTO_DIM)]
    off += PROTO_DIM
    logalpha = [params_ref[off + k] for k in range(PROTO_DIM)]

    ones = jnp.ones((chunk_rows, 128), jnp.float32)   # hoisted, not per-iter

    def chunk_body(i, carry):
        r0 = pl.multiple_of(i * chunk_rows, chunk_rows)
        xs = [x_ref[c, pl.ds(r0, chunk_rows), :] for c in range(cin)]  # (CR,128)

        p_c = [ones for _ in range(CLASS_DIM)]   # prod_k (1 - s_k*(1 - U_kj))
        p_u = ones                               # prod_k (1 - s_k)

        for k in range(PROTO_DIM):
            # d_k = sum_c (x_c - W_kc)^2 -- full-vreg VPU ops, tree-reduced.
            sq = []
            for c in range(cin):
                diff = xs[c] - w[k][c]
                sq.append(diff * diff)
            while len(sq) > 1:
                sq = [sq[i2] + sq[i2 + 1] if i2 + 1 < len(sq) else sq[i2]
                      for i2 in range(0, len(sq), 2)]
            d = sq[0]

            # s_k = alphap_k * exp(-0.5*gamma_k^2*d_k)   (constants pre-folded)
            s = jnp.exp(logalpha[k] - g2h[k] * d)        # EUP
            one_m_s = 1.0 - s
            p_u = p_u * one_m_s
            for j in range(CLASS_DIM):
                p_c[j] = p_c[j] * (one_m_s + s * u[k][j])

        m_c = [p_c[j] - p_u for j in range(CLASS_DIM)]
        total = p_u
        for j in range(CLASS_DIM):
            total = total + m_c[j]
        inv_k = pl.reciprocal(total, approx=False)       # exact 1/K

        for j in range(CLASS_DIM):
            out_ref[j, pl.ds(r0, chunk_rows), :] = m_c[j] * inv_k
        out_ref[CLASS_DIM, pl.ds(r0, chunk_rows), :] = p_u * inv_k
        return carry

    lax.fori_loop(0, num_chunks, chunk_body, 0,
                  unroll=2 if num_chunks >= 2 else 1)


def _pick_block_rows(r_total, batch, max_rows=512, min_steps=4):
    """Pick the sublane-row block: divides r_total, is a multiple of 8 (or the
    full extent), prefers <= max_rows and >= min_steps total grid steps."""
    cands = {r_total}
    for r in range(8, min(r_total, max_rows) + 1, 8):
        if r_total % r == 0:
            cands.add(r)

    def score(r):
        return (batch * (r_total // r) >= min_steps, r <= max_rows, r)

    return max(cands, key=score)


def ds1_forward(x, W, BETA, alpha, gamma, *, block_rows=None):
    """Pallas implementation of DsFunction1.forward (forward pass only)."""
    B, Cin, H, Wd, D = x.shape
    HWD = H * Wd * D
    HWD_pad = ((HWD + 127) // 128) * 128
    r_total = HWD_pad // 128

    # Pure reshape (channel-major kept) -- no transpose.  Pad only if the
    # pixel count is not 128-aligned (rare for U-Net feature maps).
    xf = x.reshape(B, Cin, HWD).astype(jnp.float32)
    if HWD_pad != HWD:
        xf = jnp.pad(xf, ((0, 0), (0, 0), (0, HWD_pad - HWD)))
    x4 = xf.reshape(B, Cin, r_total, 128)

    if block_rows is None:
        block_rows = _pick_block_rows(r_total, B)
    assert r_total % block_rows == 0
    assert block_rows % 8 == 0 or block_rows == r_total
    chunk_rows = max(r for r in range(1, min(block_rows, 8) + 1)
                     if block_rows % r == 0)

    # Tiny parameter preprocessing (matches the PyTorch reference), packed
    # into a single flat SMEM array: [W | U | 0.5*gamma^2 | log(alphap)].
    BETA2 = (BETA * BETA).astype(jnp.float32)
    U = BETA2 / jnp.sum(BETA2, axis=1, keepdims=True)                        # (P, C)
    alphap = 0.99 / (1.0 + jnp.exp(-alpha.reshape(PROTO_DIM).astype(jnp.float32)))
    logalpha = jnp.log(alphap)                                               # (P,)
    g2h = 0.5 * gamma.reshape(PROTO_DIM).astype(jnp.float32) ** 2            # (P,)
    params = jnp.concatenate([
        W.astype(jnp.float32).reshape(-1),
        U.reshape(-1),
        g2h,
        logalpha,
    ])

    kernel = functools.partial(_ds1_kernel, chunk_rows=chunk_rows)

    out = pl.pallas_call(
        kernel,
        out_shape=jax.ShapeDtypeStruct((B, CLASS_DIM + 1, r_total, 128),
                                       jnp.float32),
        grid_spec=pltpu.PrefetchScalarGridSpec(
            num_scalar_prefetch=0,
            grid=(B, r_total // block_rows),
            in_specs=[
                pl.BlockSpec(memory_space=pltpu.MemorySpace.SMEM),   # params
                pl.BlockSpec((None, Cin, block_rows, 128),
                             lambda b, i: (b, 0, i, 0)),
            ],
            out_specs=pl.BlockSpec((None, CLASS_DIM + 1, block_rows, 128),
                                   lambda b, i: (b, 0, i, 0)),
        ),
        compiler_params=pltpu.CompilerParams(
            dimension_semantics=("parallel", "parallel")),
    )(params, x4)

    out = out.reshape(B, CLASS_DIM + 1, HWD_pad)
    if HWD_pad != HWD:
        out = out[:, :, :HWD]
    return out.reshape(B, CLASS_DIM + 1, H, Wd, D)


def ds1_reference(x, W, BETA, alpha, gamma):
    """Pure-JAX transcription of DsFunction1.forward (correctness check)."""
    B, Cin, H, Wd, D = x.shape
    BETA2 = BETA * BETA
    beta2 = jnp.sum(BETA2, axis=1)
    U = BETA2 / beta2[:, None]
    alphap = 0.99 / (1.0 + jnp.exp(-alpha))
    xp = jnp.transpose(x, (1, 0, 2, 3, 4))                        # (Cin, B, H, W, D)
    mk = jnp.concatenate(
        [jnp.zeros((CLASS_DIM, B, H, Wd, D), jnp.float32),
         jnp.ones((1, B, H, Wd, D), jnp.float32)], axis=0)
    for k in range(PROTO_DIM):
        temp = xp - W[k][:, None, None, None, None]
        d = 0.5 * jnp.sum(temp * temp, axis=0)
        expo = jnp.exp(-gamma[k, 0] ** 2 * d)
        s = alphap[k, 0] * expo
        m_c = U[k][:, None, None, None, None] * s[None]
        m_u = 1.0 - s
        t2 = mk[:CLASS_DIM] * (m_c + m_u[None])
        t3 = m_c * mk[CLASS_DIM][None]
        t4 = mk[CLASS_DIM] * m_u
        mk = jnp.concatenate([t2 + t3, t4[None]], axis=0)
    K = mk.sum(0)
    return jnp.transpose(mk / K[None], (1, 0, 2, 3, 4))


# TODO(synk): only the forward pass of DsFunction1 is implemented; the custom
# backward (DW/Dbeta/Dalpha/Dgamma/Dinput) is not translated.

if __name__ == "__main__":
    # Ds1(input_dim=4, prototpye_dim=10, class_dim=2)
    B, Cin, H, Wd, D = 2, 4, 8, 8, 8

    key = jax.random.PRNGKey(0)
    kx, kw, kb = jax.random.split(key, 3)

    x = jax.random.normal(kx, (B, Cin, H, Wd, D), dtype=jnp.float32)
    # deterministic parameter init mirroring reset_parameters():
    W = jax.random.normal(kw, (PROTO_DIM, Cin), dtype=jnp.float32)            # normal_
    BETA = jax.random.normal(kb, (PROTO_DIM, CLASS_DIM), dtype=jnp.float32)   # normal_
    gamma = jnp.full((PROTO_DIM, 1), 0.1, dtype=jnp.float32)                  # constant_ 0.1
    alpha = jnp.zeros((PROTO_DIM, 1), dtype=jnp.float32)                      # constant_ 0

    out = jax.block_until_ready(ds1_forward(x, W, BETA, alpha, gamma))
    ref = jax.block_until_ready(ds1_reference(x, W, BETA, alpha, gamma))

    assert out.shape == (B, CLASS_DIM + 1, H, Wd, D)
    max_err = float(jnp.max(jnp.abs(out - ref)))
    assert jnp.allclose(out, ref, rtol=2e-4, atol=1e-5), max_err

    print("KERNEL_OK")
</pallas_src>

<mosaic_0001>
module attributes {stable_mosaic.version = 11 : i64} {
  func.func @_ds1_kernel(%arg0: i32, %arg1: i32, %arg2: memref<80xf32, #tpu.memory_space<smem>>, %arg3: memref<1x4x4x128xf32, #tpu.memory_space<vmem>>, %arg4: memref<1x3x4x128xf32, #tpu.memory_space<vmem>>) attributes {dimension_semantics = [#tpu.dimension_semantics<parallel>, #tpu.dimension_semantics<parallel>], iteration_bounds = array<i64: 2, 1>, scalar_prefetch = 0 : i64, scratch_operands = 0 : i64, tpu.core_type = #tpu.core_type<tc>, window_params = [{transform_indices = @transform_0, window_bounds = array<i64: 80>}, {transform_indices = @transform_1, window_bounds = array<i64: 1, 4, 4, 128>}, {transform_indices = @transform_2, window_bounds = array<i64: 1, 3, 4, 128>}]} {
    %c0 = arith.constant 0 : index
    %0 = memref.load %arg2[%c0] : memref<80xf32, #tpu.memory_space<smem>>
    %c1 = arith.constant 1 : index
    %1 = memref.load %arg2[%c1] : memref<80xf32, #tpu.memory_space<smem>>
    %c2 = arith.constant 2 : index
    %2 = memref.load %arg2[%c2] : memref<80xf32, #tpu.memory_space<smem>>
    %c3 = arith.constant 3 : index
    %3 = memref.load %arg2[%c3] : memref<80xf32, #tpu.memory_space<smem>>
    %c4 = arith.constant 4 : index
    %4 = memref.load %arg2[%c4] : memref<80xf32, #tpu.memory_space<smem>>
    %c5 = arith.constant 5 : index
    %5 = memref.load %arg2[%c5] : memref<80xf32, #tpu.memory_space<smem>>
    %c6 = arith.constant 6 : index
    %6 = memref.load %arg2[%c6] : memref<80xf32, #tpu.memory_space<smem>>
    %c7 = arith.constant 7 : index
    %7 = memref.load %arg2[%c7] : memref<80xf32, #tpu.memory_space<smem>>
    %c8 = arith.constant 8 : index
    %8 = memref.load %arg2[%c8] : memref<80xf32, #tpu.memory_space<smem>>
    %c9 = arith.constant 9 : index
    %9 = memref.load %arg2[%c9] : memref<80xf32, #tpu.memory_space<smem>>
    %c10 = arith.constant 10 : index
    %10 = memref.load %arg2[%c10] : memref<80xf32, #tpu.memory_space<smem>>
    %c11 = arith.constant 11 : index
    %11 = memref.load %arg2[%c11] : memref<80xf32, #tpu.memory_space<smem>>
    %c12 = arith.constant 12 : index
    %12 = memref.load %arg2[%c12] : memref<80xf32, #tpu.memory_space<smem>>
    %c13 = arith.constant 13 : index
    %13 = memref.load %arg2[%c13] : memref<80xf32, #tpu.memory_space<smem>>
    %c14 = arith.constant 14 : index
    %14 = memref.load %arg2[%c14] : memref<80xf32, #tpu.memory_space<smem>>
    %c15 = arith.constant 15 : index
    %15 = memref.load %arg2[%c15] : memref<80xf32, #tpu.memory_space<smem>>
    %c16 = arith.constant 16 : index
    %16 = memref.load %arg2[%c16] : memref<80xf32, #tpu.memory_space<smem>>
    %c17 = arith.constant 17 : index
    %17 = memref.load %arg2[%c17] : memref<80xf32, #tpu.memory_space<smem>>
    %c18 = arith.constant 18 : index
    %18 = memref.load %arg2[%c18] : memref<80xf32, #tpu.memory_space<smem>>
    %c19 = arith.constant 19 : index
    %19 = memref.load %arg2[%c19] : memref<80xf32, #tpu.memory_space<smem>>
    %c20 = arith.constant 20 : index
    %20 = memref.load %arg2[%c20] : memref<80xf32, #tpu.memory_space<smem>>
    %c21 = arith.constant 21 : index
    %21 = memref.load %arg2[%c21] : memref<80xf32, #tpu.memory_space<smem>>
    %c22 = arith.constant 22 : index
    %22 = memref.load %arg2[%c22] : memref<80xf32, #tpu.memory_space<smem>>
    %c23 = arith.constant 23 : index
    %23 = memref.load %arg2[%c23] : memref<80xf32, #tpu.memory_space<smem>>
    %c24 = arith.constant 24 : index
    %24 = memref.load %arg2[%c24] : memref<80xf32, #tpu.memory_space<smem>>
    %c25 = arith.constant 25 : index
    %25 = memref.load %arg2[%c25] : memref<80xf32, #tpu.memory_space<smem>>
    %c26 = arith.constant 26 : index
    %26 = memref.load %arg2[%c26] : memref<80xf32, #tpu.memory_space<smem>>
    %c27 = arith.constant 27 : index
    %27 = memref.load %arg2[%c27] : memref<80xf32, #tpu.memory_space<smem>>
    %c28 = arith.constant 28 : index
    %28 = memref.load %arg2[%c28] : memref<80xf32, #tpu.memory_space<smem>>
    %c29 = arith.constant 29 : index
    %29 = memref.load %arg2[%c29] : memref<80xf32, #tpu.memory_space<smem>>
    %c30 = arith.constant 30 : index
    %30 = memref.load %arg2[%c30] : memref<80xf32, #tpu.memory_space<smem>>
    %c31 = arith.constant 31 : index
    %31 = memref.load %arg2[%c31] : memref<80xf32, #tpu.memory_space<smem>>
    %c32 = arith.constant 32 : index
    %32 = memref.load %arg2[%c32] : memref<80xf32, #tpu.memory_space<smem>>
    %c33 = arith.constant 33 : index
    %33 = memref.load %arg2[%c33] : memref<80xf32, #tpu.memory_space<smem>>
    %c34 = arith.constant 34 : index
    %34 = memref.load %arg2[%c34] : memref<80xf32, #tpu.memory_space<smem>>
    %c35 = arith.constant 35 : index
    %35 = memref.load %arg2[%c35] : memref<80xf32, #tpu.memory_space<smem>>
    %c36 = arith.constant 36 : index
    %36 = memref.load %arg2[%c36] : memref<80xf32, #tpu.memory_space<smem>>
    %c37 = arith.constant 37 : index
    %37 = memref.load %arg2[%c37] : memref<80xf32, #tpu.memory_space<smem>>
    %c38 = arith.constant 38 : index
    %38 = memref.load %arg2[%c38] : memref<80xf32, #tpu.memory_space<smem>>
    %c39 = arith.constant 39 : index
    %39 = memref.load %arg2[%c39] : memref<80xf32, #tpu.memory_space<smem>>
    %c40 = arith.constant 40 : index
    %40 = memref.load %arg2[%c40] : memref<80xf32, #tpu.memory_space<smem>>
    %c41 = arith.constant 41 : index
    %41 = memref.load %arg2[%c41] : memref<80xf32, #tpu.memory_space<smem>>
    %c42 = arith.constant 42 : index
    %42 = memref.load %arg2[%c42] : memref<80xf32, #tpu.memory_space<smem>>
    %c43 = arith.constant 43 : index
    %43 = memref.load %arg2[%c43] : memref<80xf32, #tpu.memory_space<smem>>
    %c44 = arith.constant 44 : index
    %44 = memref.load %arg2[%c44] : memref<80xf32, #tpu.memory_space<smem>>
    %c45 = arith.constant 45 : index
    %45 = memref.load %arg2[%c45] : memref<80xf32, #tpu.memory_space<smem>>
    %c46 = arith.constant 46 : index
    %46 = memref.load %arg2[%c46] : memref<80xf32, #tpu.memory_space<smem>>
    %c47 = arith.constant 47 : index
    %47 = memref.load %arg2[%c47] : memref<80xf32, #tpu.memory_space<smem>>
    %c48 = arith.constant 48 : index
    %48 = memref.load %arg2[%c48] : memref<80xf32, #tpu.memory_space<smem>>
    %c49 = arith.constant 49 : index
    %49 = memref.load %arg2[%c49] : memref<80xf32, #tpu.memory_space<smem>>
    %c50 = arith.constant 50 : index
    %50 = memref.load %arg2[%c50] : memref<80xf32, #tpu.memory_space<smem>>
    %c51 = arith.constant 51 : index
    %51 = memref.load %arg2[%c51] : memref<80xf32, #tpu.memory_space<smem>>
    %c52 = arith.constant 52 : index
    %52 = memref.load %arg2[%c52] : memref<80xf32, #tpu.memory_space<smem>>
    %c53 = arith.constant 53 : index
    %53 = memref.load %arg2[%c53] : memref<80xf32, #tpu.memory_space<smem>>
    %c54 = arith.constant 54 : index
    %54 = memref.load %arg2[%c54] : memref<80xf32, #tpu.memory_space<smem>>
    %c55 = arith.constant 55 : index
    %55 = memref.load %arg2[%c55] : memref<80xf32, #tpu.memory_space<smem>>
    %c56 = arith.constant 56 : index
    %56 = memref.load %arg2[%c56] : memref<80xf32, #tpu.memory_space<smem>>
    %c57 = arith.constant 57 : index
    %57 = memref.load %arg2[%c57] : memref<80xf32, #tpu.memory_space<smem>>
    %c58 = arith.constant 58 : index
    %58 = memref.load %arg2[%c58] : memref<80xf32, #tpu.memory_space<smem>>
    %c59 = arith.constant 59 : index
    %59 = memref.load %arg2[%c59] : memref<80xf32, #tpu.memory_space<smem>>
    %c60 = arith.constant 60 : index
    %60 = memref.load %arg2[%c60] : memref<80xf32, #tpu.memory_space<smem>>
    %c61 = arith.constant 61 : index
    %61 = memref.load %arg2[%c61] : memref<80xf32, #tpu.memory_space<smem>>
    %c62 = arith.constant 62 : index
    %62 = memref.load %arg2[%c62] : memref<80xf32, #tpu.memory_space<smem>>
    %c63 = arith.constant 63 : index
    %63 = memref.load %arg2[%c63] : memref<80xf32, #tpu.memory_space<smem>>
    %c64 = arith.constant 64 : index
    %64 = memref.load %arg2[%c64] : memref<80xf32, #tpu.memory_space<smem>>
    %c65 = arith.constant 65 : index
    %65 = memref.load %arg2[%c65] : memref<80xf32, #tpu.memory_space<smem>>
    %c66 = arith.constant 66 : index
    %66 = memref.load %arg2[%c66] : memref<80xf32, #tpu.memory_space<smem>>
    %c67 = arith.constant 67 : index
    %67 = memref.load %arg2[%c67] : memref<80xf32, #tpu.memory_space<smem>>
    %c68 = arith.constant 68 : index
    %68 = memref.load %arg2[%c68] : memref<80xf32, #tpu.memory_space<smem>>
    %c69 = arith.constant 69 : index
    %69 = memref.load %arg2[%c69] : memref<80xf32, #tpu.memory_space<smem>>
    %c70 = arith.constant 70 : index
    %70 = memref.load %arg2[%c70] : memref<80xf32, #tpu.memory_space<smem>>
    %c71 = arith.constant 71 : index
    %71 = memref.load %arg2[%c71] : memref<80xf32, #tpu.memory_space<smem>>
    %c72 = arith.constant 72 : index
    %72 = memref.load %arg2[%c72] : memref<80xf32, #tpu.memory_space<smem>>
    %c73 = arith.constant 73 : index
    %73 = memref.load %arg2[%c73] : memref<80xf32, #tpu.memory_space<smem>>
    %c74 = arith.constant 74 : index
    %74 = memref.load %arg2[%c74] : memref<80xf32, #tpu.memory_space<smem>>
    %c75 = arith.constant 75 : index
    %75 = memref.load %arg2[%c75] : memref<80xf32, #tpu.memory_space<smem>>
    %c76 = arith.constant 76 : index
    %76 = memref.load %arg2[%c76] : memref<80xf32, #tpu.memory_space<smem>>
    %c77 = arith.constant 77 : index
    %77 = memref.load %arg2[%c77] : memref<80xf32, #tpu.memory_space<smem>>
    %c78 = arith.constant 78 : index
    %78 = memref.load %arg2[%c78] : memref<80xf32, #tpu.memory_space<smem>>
    %c79 = arith.constant 79 : index
    %79 = memref.load %arg2[%c79] : memref<80xf32, #tpu.memory_space<smem>>
    %cst = arith.constant 1.000000e+00 : f32
    %80 = vector.broadcast %cst : f32 to vector<4x128xf32>
    %c0_i32 = arith.constant 0 : i32
    %c4_i32 = arith.constant 4 : i32
    %81 = arith.muli %c0_i32, %c4_i32 : i32
    %82 = tpu.assume_multiple %81, 4 : i32
    %c0_0 = arith.constant 0 : index
    %c0_1 = arith.constant 0 : index
    %83 = arith.index_cast %82 : i32 to index
    %c0_2 = arith.constant 0 : index
    %84 = vector.load %arg3[%c0_0, %c0_1, %83, %c0_2] : memref<1x4x4x128xf32, #tpu.memory_space<vmem>>, vector<1x1x4x128xf32>
    %85 = vector.shape_cast %84 : vector<1x1x4x128xf32> to vector<4x128xf32>
    %c0_3 = arith.constant 0 : index
    %c1_4 = arith.constant 1 : index
    %86 = arith.index_cast %82 : i32 to index
    %c0_5 = arith.constant 0 : index
    %87 = vector.load %arg3[%c0_3, %c1_4, %86, %c0_5] : memref<1x4x4x128xf32, #tpu.memory_space<vmem>>, vector<1x1x4x128xf32>
    %88 = vector.shape_cast %87 : vector<1x1x4x128xf32> to vector<4x128xf32>
    %c0_6 = arith.constant 0 : index
    %c2_7 = arith.constant 2 : index
    %89 = arith.index_cast %82 : i32 to index
    %c0_8 = arith.constant 0 : index
    %90 = vector.load %arg3[%c0_6, %c2_7, %89, %c0_8] : memref<1x4x4x128xf32, #tpu.memory_space<vmem>>, vector<1x1x4x128xf32>
    %91 = vector.shape_cast %90 : vector<1x1x4x128xf32> to vector<4x128xf32>
    %c0_9 = arith.constant 0 : index
    %c3_10 = arith.constant 3 : index
    %92 = arith.index_cast %82 : i32 to index
    %c0_11 = arith.constant 0 : index
    %93 = vector.load %arg3[%c0_9, %c3_10, %92, %c0_11] : memref<1x4x4x128xf32, #tpu.memory_space<vmem>>, vector<1x1x4x128xf32>
    %94 = vector.shape_cast %93 : vector<1x1x4x128xf32> to vector<4x128xf32>
    %95 = vector.broadcast %0 : f32 to vector<4x128xf32>
    %96 = arith.subf %85, %95 : vector<4x128xf32>
    %97 = arith.mulf %96, %96 : vector<4x128xf32>
    %98 = vector.broadcast %1 : f32 to vector<4x128xf32>
    %99 = arith.subf %88, %98 : vector<4x128xf32>
    %100 = arith.mulf %99, %99 : vector<4x128xf32>
    %101 = vector.broadcast %2 : f32 to vector<4x128xf32>
    %102 = arith.subf %91, %101 : vector<4x128xf32>
    %103 = arith.mulf %102, %102 : vector<4x128xf32>
    %104 = vector.broadcast %3 : f32 to vector<4x128xf32>
    %105 = arith.subf %94, %104 : vector<4x128xf32>
    %106 = arith.mulf %105, %105 : vector<4x128xf32>
    %107 = arith.addf %97, %100 : vector<4x128xf32>
    %108 = arith.addf %103, %106 : vector<4x128xf32>
    %109 = arith.addf %107, %108 : vector<4x128xf32>
    %110 = vector.broadcast %60 : f32 to vector<4x128xf32>
    %111 = arith.mulf %110, %109 : vector<4x128xf32>
    %112 = vector.broadcast %70 : f32 to vector<4x128xf32>
    %113 = arith.subf %112, %111 : vector<4x128xf32>
    %114 = math.exp %113 : vector<4x128xf32>
    %cst_12 = arith.constant 1.000000e+00 : f32
    %115 = vector.broadcast %cst_12 : f32 to vector<4x128xf32>
    %116 = arith.subf %115, %114 : vector<4x128xf32>
    %117 = arith.mulf %80, %116 : vector<4x128xf32>
    %118 = vector.broadcast %40 : f32 to vector<4x128xf32>
    %119 = arith.mulf %114, %118 : vector<4x128xf32>
    %120 = arith.addf %116, %119 : vector<4x128xf32>
    %121 = arith.mulf %80, %120 : vector<4x128xf32>
    %122 = vector.broadcast %41 : f32 to vector<4x128xf32>
    %123 = arith.mulf %114, %122 : vector<4x128xf32>
    %124 = arith.addf %116, %123 : vector<4x128xf32>
    %125 = arith.mulf %80, %124 : vector<4x128xf32>
    %126 = vector.broadcast %4 : f32 to vector<4x128xf32>
    %127 = arith.subf %85, %126 : vector<4x128xf32>
    %128 = arith.mulf %127, %127 : vector<4x128xf32>
    %129 = vector.broadcast %5 : f32 to vector<4x128xf32>
    %130 = arith.subf %88, %129 : vector<4x128xf32>
    %131 = arith.mulf %130, %130 : vector<4x128xf32>
    %132 = vector.broadcast %6 : f32 to vector<4x128xf32>
    %133 = arith.subf %91, %132 : vector<4x128xf32>
    %134 = arith.mulf %133, %133 : vector<4x128xf32>
    %135 = vector.broadcast %7 : f32 to vector<4x128xf32>
    %136 = arith.subf %94, %135 : vector<4x128xf32>
    %137 = arith.mulf %136, %136 : vector<4x128xf32>
    %138 = arith.addf %128, %131 : vector<4x128xf32>
    %139 = arith.addf %134, %137 : vector<4x128xf32>
    %140 = arith.addf %138, %139 : vector<4x128xf32>
    %141 = vector.broadcast %61 : f32 to vector<4x128xf32>
    %142 = arith.mulf %141, %140 : vector<4x128xf32>
    %143 = vector.broadcast %71 : f32 to vector<4x128xf32>
    %144 = arith.subf %143, %142 : vector<4x128xf32>
    %145 = math.exp %144 : vector<4x128xf32>
    %cst_13 = arith.constant 1.000000e+00 : f32
    %146 = vector.broadcast %cst_13 : f32 to vector<4x128xf32>
    %147 = arith.subf %146, %145 : vector<4x128xf32>
    %148 = arith.mulf %117, %147 : vector<4x128xf32>
    %149 = vector.broadcast %42 : f32 to vector<4x128xf32>
    %150 = arith.mulf %145, %149 : vector<4x128xf32>
    %151 = arith.addf %147, %150 : vector<4x128xf32>
    %152 = arith.mulf %121, %151 : vector<4x128xf32>
    %153 = vector.broadcast %43 : f32 to vector<4x128xf32>
    %154 = arith.mulf %145, %153 : vector<4x128xf32>
    %155 = arith.addf %147, %154 : vector<4x128xf32>
    %156 = arith.mulf %125, %155 : vector<4x128xf32>
    %157 = vector.broadcast %8 : f32 to vector<4x128xf32>
    %158 = arith.subf %85, %157 : vector<4x128xf32>
    %159 = arith.mulf %158, %158 : vector<4x128xf32>
    %160 = vector.broadcast %9 : f32 to vector<4x128xf32>
    %161 = arith.subf %88, %160 : vector<4x128xf32>
    %162 = arith.mulf %161, %161 : vector<4x128xf32>
    %163 = vector.broadcast %10 : f32 to vector<4x128xf32>
    %164 = arith.subf %91, %163 : vector<4x128xf32>
    %165 = arith.mulf %164, %164 : vector<4x128xf32>
    %166 = vector.broadcast %11 : f32 to vector<4x128xf32>
    %167 = arith.subf %94, %166 : vector<4x128xf32>
    %168 = arith.mulf %167, %167 : vector<4x128xf32>
    %169 = arith.addf %159, %162 : vector<4x128xf32>
    %170 = arith.addf %165, %168 : vector<4x128xf32>
    %171 = arith.addf %169, %170 : vector<4x128xf32>
    %172 = vector.broadcast %62 : f32 to vector<4x128xf32>
    %173 = arith.mulf %172, %171 : vector<4x128xf32>
    %174 = vector.broadcast %72 : f32 to vector<4x128xf32>
    %175 = arith.subf %174, %173 : vector<4x128xf32>
    %176 = math.exp %175 : vector<4x128xf32>
    %cst_14 = arith.constant 1.000000e+00 : f32
    %177 = vector.broadcast %cst_14 : f32 to vector<4x128xf32>
    %178 = arith.subf %177, %176 : vector<4x128xf32>
    %179 = arith.mulf %148, %178 : vector<4x128xf32>
    %180 = vector.broadcast %44 : f32 to vector<4x128xf32>
    %181 = arith.mulf %176, %180 : vector<4x128xf32>
    %182 = arith.addf %178, %181 : vector<4x128xf32>
    %183 = arith.mulf %152, %182 : vector<4x128xf32>
    %184 = vector.broadcast %45 : f32 to vector<4x128xf32>
    %185 = arith.mulf %176, %184 : vector<4x128xf32>
    %186 = arith.addf %178, %185 : vector<4x128xf32>
    %187 = arith.mulf %156, %186 : vector<4x128xf32>
    %188 = vector.broadcast %12 : f32 to vector<4x128xf32>
    %189 = arith.subf %85, %188 : vector<4x128xf32>
    %190 = arith.mulf %189, %189 : vector<4x128xf32>
    %191 = vector.broadcast %13 : f32 to vector<4x128xf32>
    %192 = arith.subf %88, %191 : vector<4x128xf32>
    %193 = arith.mulf %192, %192 : vector<4x128xf32>
    %194 = vector.broadcast %14 : f32 to vector<4x128xf32>
    %195 = arith.subf %91, %194 : vector<4x128xf32>
    %196 = arith.mulf %195, %195 : vector<4x128xf32>
    %197 = vector.broadcast %15 : f32 to vector<4x128xf32>
    %198 = arith.subf %94, %197 : vector<4x128xf32>
    %199 = arith.mulf %198, %198 : vector<4x128xf32>
    %200 = arith.addf %190, %193 : vector<4x128xf32>
    %201 = arith.addf %196, %199 : vector<4x128xf32>
    %202 = arith.addf %200, %201 : vector<4x128xf32>
    %203 = vector.broadcast %63 : f32 to vector<4x128xf32>
    %204 = arith.mulf %203, %202 : vector<4x128xf32>
    %205 = vector.broadcast %73 : f32 to vector<4x128xf32>
    %206 = arith.subf %205, %204 : vector<4x128xf32>
    %207 = math.exp %206 : vector<4x128xf32>
    %cst_15 = arith.constant 1.000000e+00 : f32
    %208 = vector.broadcast %cst_15 : f32 to vector<4x128xf32>
    %209 = arith.subf %208, %207 : vector<4x128xf32>
    %210 = arith.mulf %179, %209 : vector<4x128xf32>
    %211 = vector.broadcast %46 : f32 to vector<4x128xf32>
    %212 = arith.mulf %207, %211 : vector<4x128xf32>
    %213 = arith.addf %209, %212 : vector<4x128xf32>
    %214 = arith.mulf %183, %213 : vector<4x128xf32>
    %215 = vector.broadcast %47 : f32 to vector<4x128xf32>
    %216 = arith.mulf %207, %215 : vector<4x128xf32>
    %217 = arith.addf %209, %216 : vector<4x128xf32>
    %218 = arith.mulf %187, %217 : vector<4x128xf32>
    %219 = vector.broadcast %16 : f32 to vector<4x128xf32>
    %220 = arith.subf %85, %219 : vector<4x128xf32>
    %221 = arith.mulf %220, %220 : vector<4x128xf32>
    %222 = vector.broadcast %17 : f32 to vector<4x128xf32>
    %223 = arith.subf %88, %222 : vector<4x128xf32>
    %224 = arith.mulf %223, %223 : vector<4x128xf32>
    %225 = vector.broadcast %18 : f32 to vector<4x128xf32>
    %226 = arith.subf %91, %225 : vector<4x128xf32>
    %227 = arith.mulf %226, %226 : vector<4x128xf32>
    %228 = vector.broadcast %19 : f32 to vector<4x128xf32>
    %229 = arith.subf %94, %228 : vector<4x128xf32>
    %230 = arith.mulf %229, %229 : vector<4x128xf32>
    %231 = arith.addf %221, %224 : vector<4x128xf32>
    %232 = arith.addf %227, %230 : vector<4x128xf32>
    %233 = arith.addf %231, %232 : vector<4x128xf32>
    %234 = vector.broadcast %64 : f32 to vector<4x128xf32>
    %235 = arith.mulf %234, %233 : vector<4x128xf32>
    %236 = vector.broadcast %74 : f32 to vector<4x128xf32>
    %237 = arith.subf %236, %235 : vector<4x128xf32>
    %238 = math.exp %237 : vector<4x128xf32>
    %cst_16 = arith.constant 1.000000e+00 : f32
    %239 = vector.broadcast %cst_16 : f32 to vector<4x128xf32>
    %240 = arith.subf %239, %238 : vector<4x128xf32>
    %241 = arith.mulf %210, %240 : vector<4x128xf32>
    %242 = vector.broadcast %48 : f32 to vector<4x128xf32>
    %243 = arith.mulf %238, %242 : vector<4x128xf32>
    %244 = arith.addf %240, %243 : vector<4x128xf32>
    %245 = arith.mulf %214, %244 : vector<4x128xf32>
    %246 = vector.broadcast %49 : f32 to vector<4x128xf32>
    %247 = arith.mulf %238, %246 : vector<4x128xf32>
    %248 = arith.addf %240, %247 : vector<4x128xf32>
    %249 = arith.mulf %218, %248 : vector<4x128xf32>
    %250 = vector.broadcast %20 : f32 to vector<4x128xf32>
    %251 = arith.subf %85, %250 : vector<4x128xf32>
    %252 = arith.mulf %251, %251 : vector<4x128xf32>
    %253 = vector.broadcast %21 : f32 to vector<4x128xf32>
    %254 = arith.subf %88, %253 : vector<4x128xf32>
    %255 = arith.mulf %254, %254 : vector<4x128xf32>
    %256 = vector.broadcast %22 : f32 to vector<4x128xf32>
    %257 = arith.subf %91, %256 : vector<4x128xf32>
    %258 = arith.mulf %257, %257 : vector<4x128xf32>
    %259 = vector.broadcast %23 : f32 to vector<4x128xf32>
    %260 = arith.subf %94, %259 : vector<4x128xf32>
    %261 = arith.mulf %260, %260 : vector<4x128xf32>
    %262 = arith.addf %252, %255 : vector<4x128xf32>
    %263 = arith.addf %258, %261 : vector<4x128xf32>
    %264 = arith.addf %262, %263 : vector<4x128xf32>
    %265 = vector.broadcast %65 : f32 to vector<4x128xf32>
    %266 = arith.mulf %265, %264 : vector<4x128xf32>
    %267 = vector.broadcast %75 : f32 to vector<4x128xf32>
    %268 = arith.subf %267, %266 : vector<4x128xf32>
    %269 = math.exp %268 : vector<4x128xf32>
    %cst_17 = arith.constant 1.000000e+00 : f32
    %270 = vector.broadcast %cst_17 : f32 to vector<4x128xf32>
    %271 = arith.subf %270, %269 : vector<4x128xf32>
    %272 = arith.mulf %241, %271 : vector<4x128xf32>
    %273 = vector.broadcast %50 : f32 to vector<4x128xf32>
    %274 = arith.mulf %269, %273 : vector<4x128xf32>
    %275 = arith.addf %271, %274 : vector<4x128xf32>
    %276 = arith.mulf %245, %275 : vector<4x128xf32>
    %277 = vector.broadcast %51 : f32 to vector<4x128xf32>
    %278 = arith.mulf %269, %277 : vector<4x128xf32>
    %279 = arith.addf %271, %278 : vector<4x128xf32>
    %280 = arith.mulf %249, %279 : vector<4x128xf32>
    %281 = vector.broadcast %24 : f32 to vector<4x128xf32>
    %282 = arith.subf %85, %281 : vector<4x128xf32>
    %283 = arith.mulf %282, %282 : vector<4x128xf32>
    %284 = vector.broadcast %25 : f32 to vector<4x128xf32>
    %285 = arith.subf %88, %284 : vector<4x128xf32>
    %286 = arith.mulf %285, %285 : vector<4x128xf32>
    %287 = vector.broadcast %26 : f32 to vector<4x128xf32>
    %288 = arith.subf %91, %287 : vector<4x128xf32>
    %289 = arith.mulf %288, %288 : vector<4x128xf32>
    %290 = vector.broadcast %27 : f32 to vector<4x128xf32>
    %291 = arith.subf %94, %290 : vector<4x128xf32>
    %292 = arith.mulf %291, %291 : vector<4x128xf32>
    %293 = arith.addf %283, %286 : vector<4x128xf32>
    %294 = arith.addf %289, %292 : vector<4x128xf32>
    %295 = arith.addf %293, %294 : vector<4x128xf32>
    %296 = vector.broadcast %66 : f32 to vector<4x128xf32>
    %297 = arith.mulf %296, %295 : vector<4x128xf32>
    %298 = vector.broadcast %76 : f32 to vector<4x128xf32>
    %299 = arith.subf %298, %297 : vector<4x128xf32>
    %300 = math.exp %299 : vector<4x128xf32>
    %cst_18 = arith.constant 1.000000e+00 : f32
    %301 = vector.broadcast %cst_18 : f32 to vector<4x128xf32>
    %302 = arith.subf %301, %300 : vector<4x128xf32>
    %303 = arith.mulf %272, %302 : vector<4x128xf32>
    %304 = vector.broadcast %52 : f32 to vector<4x128xf32>
    %305 = arith.mulf %300, %304 : vector<4x128xf32>
    %306 = arith.addf %302, %305 : vector<4x128xf32>
    %307 = arith.mulf %276, %306 : vector<4x128xf32>
    %308 = vector.broadcast %53 : f32 to vector<4x128xf32>
    %309 = arith.mulf %300, %308 : vector<4x128xf32>
    %310 = arith.addf %302, %309 : vector<4x128xf32>
    %311 = arith.mulf %280, %310 : vector<4x128xf32>
    %312 = vector.broadcast %28 : f32 to vector<4x128xf32>
    %313 = arith.subf %85, %312 : vector<4x128xf32>
    %314 = arith.mulf %313, %313 : vector<4x128xf32>
    %315 = vector.broadcast %29 : f32 to vector<4x128xf32>
    %316 = arith.subf %88, %315 : vector<4x128xf32>
    %317 = arith.mulf %316, %316 : vector<4x128xf32>
    %318 = vector.broadcast %30 : f32 to vector<4x128xf32>
    %319 = arith.subf %91, %318 : vector<4x128xf32>
    %320 = arith.mulf %319, %319 : vector<4x128xf32>
    %321 = vector.broadcast %31 : f32 to vector<4x128xf32>
    %322 = arith.subf %94, %321 : vector<4x128xf32>
    %323 = arith.mulf %322, %322 : vector<4x128xf32>
    %324 = arith.addf %314, %317 : vector<4x128xf32>
    %325 = arith.addf %320, %323 : vector<4x128xf32>
    %326 = arith.addf %324, %325 : vector<4x128xf32>
    %327 = vector.broadcast %67 : f32 to vector<4x128xf32>
    %328 = arith.mulf %327, %326 : vector<4x128xf32>
    %329 = vector.broadcast %77 : f32 to vector<4x128xf32>
    %330 = arith.subf %329, %328 : vector<4x128xf32>
    %331 = math.exp %330 : vector<4x128xf32>
    %cst_19 = arith.constant 1.000000e+00 : f32
    %332 = vector.broadcast %cst_19 : f32 to vector<4x128xf32>
    %333 = arith.subf %332, %331 : vector<4x128xf32>
    %334 = arith.mulf %303, %333 : vector<4x128xf32>
    %335 = vector.broadcast %54 : f32 to vector<4x128xf32>
    %336 = arith.mulf %331, %335 : vector<4x128xf32>
    %337 = arith.addf %333, %336 : vector<4x128xf32>
    %338 = arith.mulf %307, %337 : vector<4x128xf32>
    %339 = vector.broadcast %55 : f32 to vector<4x128xf32>
    %340 = arith.mulf %331, %339 : vector<4x128xf32>
    %341 = arith.addf %333, %340 : vector<4x128xf32>
    %342 = arith.mulf %311, %341 : vector<4x128xf32>
    %343 = vector.broadcast %32 : f32 to vector<4x128xf32>
    %344 = arith.subf %85, %343 : vector<4x128xf32>
    %345 = arith.mulf %344, %344 : vector<4x128xf32>
    %346 = vector.broadcast %33 : f32 to vector<4x128xf32>
    %347 = arith.subf %88, %346 : vector<4x128xf32>
    %348 = arith.mulf %347, %347 : vector<4x128xf32>
    %349 = vector.broadcast %34 : f32 to vector<4x128xf32>
    %350 = arith.subf %91, %349 : vector<4x128xf32>
    %351 = arith.mulf %350, %350 : vector<4x128xf32>
    %352 = vector.broadcast %35 : f32 to vector<4x128xf32>
    %353 = arith.subf %94, %352 : vector<4x128xf32>
    %354 = arith.mulf %353, %353 : vector<4x128xf32>
    %355 = arith.addf %345, %348 : vector<4x128xf32>
    %356 = arith.addf %351, %354 : vector<4x128xf32>
    %357 = arith.addf %355, %356 : vector<4x128xf32>
    %358 = vector.broadcast %68 : f32 to vector<4x128xf32>
    %359 = arith.mulf %358, %357 : vector<4x128xf32>
    %360 = vector.broadcast %78 : f32 to vector<4x128xf32>
    %361 = arith.subf %360, %359 : vector<4x128xf32>
    %362 = math.exp %361 : vector<4x128xf32>
    %cst_20 = arith.constant 1.000000e+00 : f32
    %363 = vector.broadcast %cst_20 : f32 to vector<4x128xf32>
    %364 = arith.subf %363, %362 : vector<4x128xf32>
    %365 = arith.mulf %334, %364 : vector<4x128xf32>
    %366 = vector.broadcast %56 : f32 to vector<4x128xf32>
    %367 = arith.mulf %362, %366 : vector<4x128xf32>
    %368 = arith.addf %364, %367 : vector<4x128xf32>
    %369 = arith.mulf %338, %368 : vector<4x128xf32>
    %370 = vector.broadcast %57 : f32 to vector<4x128xf32>
    %371 = arith.mulf %362, %370 : vector<4x128xf32>
    %372 = arith.addf %364, %371 : vector<4x128xf32>
    %373 = arith.mulf %342, %372 : vector<4x128xf32>
    %374 = vector.broadcast %36 : f32 to vector<4x128xf32>
    %375 = arith.subf %85, %374 : vector<4x128xf32>
    %376 = arith.mulf %375, %375 : vector<4x128xf32>
    %377 = vector.broadcast %37 : f32 to vector<4x128xf32>
    %378 = arith.subf %88, %377 : vector<4x128xf32>
    %379 = arith.mulf %378, %378 : vector<4x128xf32>
    %380 = vector.broadcast %38 : f32 to vector<4x128xf32>
    %381 = arith.subf %91, %380 : vector<4x128xf32>
    %382 = arith.mulf %381, %381 : vector<4x128xf32>
    %383 = vector.broadcast %39 : f32 to vector<4x128xf32>
    %384 = arith.subf %94, %383 : vector<4x128xf32>
    %385 = arith.mulf %384, %384 : vector<4x128xf32>
    %386 = arith.addf %376, %379 : vector<4x128xf32>
    %387 = arith.addf %382, %385 : vector<4x128xf32>
    %388 = arith.addf %386, %387 : vector<4x128xf32>
    %389 = vector.broadcast %69 : f32 to vector<4x128xf32>
    %390 = arith.mulf %389, %388 : vector<4x128xf32>
    %391 = vector.broadcast %79 : f32 to vector<4x128xf32>
    %392 = arith.subf %391, %390 : vector<4x128xf32>
    %393 = math.exp %392 : vector<4x128xf32>
    %cst_21 = arith.constant 1.000000e+00 : f32
    %394 = vector.broadcast %cst_21 : f32 to vector<4x128xf32>
    %395 = arith.subf %394, %393 : vector<4x128xf32>
    %396 = arith.mulf %365, %395 : vector<4x128xf32>
    %397 = vector.broadcast %58 : f32 to vector<4x128xf32>
    %398 = arith.mulf %393, %397 : vector<4x128xf32>
    %399 = arith.addf %395, %398 : vector<4x128xf32>
    %400 = arith.mulf %369, %399 : vector<4x128xf32>
    %401 = vector.broadcast %59 : f32 to vector<4x128xf32>
    %402 = arith.mulf %393, %401 : vector<4x128xf32>
    %403 = arith.addf %395, %402 : vector<4x128xf32>
    %404 = arith.mulf %373, %403 : vector<4x128xf32>
    %405 = arith.subf %400, %396 : vector<4x128xf32>
    %406 = arith.subf %404, %396 : vector<4x128xf32>
    %407 = arith.addf %396, %405 : vector<4x128xf32>
    %408 = arith.addf %407, %406 : vector<4x128xf32>
    %409 = tpu.reciprocal %408 : vector<4x128xf32> -> vector<4x128xf32>
    %410 = arith.mulf %405, %409 : vector<4x128xf32>
    %c0_22 = arith.constant 0 : index
    %c0_23 = arith.constant 0 : index
    %411 = arith.index_cast %82 : i32 to index
    %c0_24 = arith.constant 0 : index
    %412 = vector.load %arg4[%c0_22, %c0_23, %411, %c0_24] : memref<1x3x4x128xf32, #tpu.memory_space<vmem>>, vector<1x1x4x128xf32>
    %413 = vector.shape_cast %412 : vector<1x1x4x128xf32> to vector<4x128xf32>
    %414 = vector.shape_cast %410 : vector<4x128xf32> to vector<1x1x4x128xf32>
    tpu.vector_store %arg4[%c0_22, %c0_23, %411, %c0_24], %414 {strides = array<i32>} : memref<1x3x4x128xf32, #tpu.memory_space<vmem>>, vector<1x1x4x128xf32>,
    %415 = arith.mulf %406, %409 : vector<4x128xf32>
    %c0_25 = arith.constant 0 : index
    %c1_26 = arith.constant 1 : index
    %416 = arith.index_cast %82 : i32 to index
    %c0_27 = arith.constant 0 : index
    %417 = vector.load %arg4[%c0_25, %c1_26, %416, %c0_27] : memref<1x3x4x128xf32, #tpu.memory_space<vmem>>, vector<1x1x4x128xf32>
    %418 = vector.shape_cast %417 : vector<1x1x4x128xf32> to vector<4x128xf32>
    %419 = vector.shape_cast %415 : vector<4x128xf32> to vector<1x1x4x128xf32>
    tpu.vector_store %arg4[%c0_25, %c1_26, %416, %c0_27], %419 {strides = array<i32>} : memref<1x3x4x128xf32, #tpu.memory_space<vmem>>, vector<1x1x4x128xf32>,
    %420 = arith.mulf %396, %409 : vector<4x128xf32>
    %c0_28 = arith.constant 0 : index
    %c2_29 = arith.constant 2 : index
    %421 = arith.index_cast %82 : i32 to index
    %c0_30 = arith.constant 0 : index
    %422 = vector.load %arg4[%c0_28, %c2_29, %421, %c0_30] : memref<1x3x4x128xf32, #tpu.memory_space<vmem>>, vector<1x1x4x128xf32>
    %423 = vector.shape_cast %422 : vector<1x1x4x128xf32> to vector<4x128xf32>
    %424 = vector.shape_cast %420 : vector<4x128xf32> to vector<1x1x4x128xf32>
    tpu.vector_store %arg4[%c0_28, %c2_29, %421, %c0_30], %424 {strides = array<i32>} : memref<1x3x4x128xf32, #tpu.memory_space<vmem>>, vector<1x1x4x128xf32>,
    %c1_i32 = arith.constant 1 : i32
    return
  }
  func.func @transform_0(%arg0: i32, %arg1: i32) -> i32 {
    %c0_i32 = arith.constant 0 : i32
    %c0_i32_0 = arith.constant 0 : i32
    return %c0_i32 : i32
  }
  func.func @transform_1(%arg0: i32, %arg1: i32) -> (i32, i32, i32, i32) {
    %c0_i32 = arith.constant 0 : i32
    %c0_i32_0 = arith.constant 0 : i32
    %c0_i32_1 = arith.constant 0 : i32
    return %arg0, %c0_i32, %arg1, %c0_i32_0 : i32, i32, i32, i32
  }
  func.func @transform_2(%arg0: i32, %arg1: i32) -> (i32, i32, i32, i32) {
    %c0_i32 = arith.constant 0 : i32
    %c0_i32_0 = arith.constant 0 : i32
    %c0_i32_1 = arith.constant 0 : i32
    return %arg0, %c0_i32, %arg1, %c0_i32_0 : i32, i32, i32, i32
  }
}

</mosaic_0001>

<llo_original>
// kernel: tpu_custom_call.1
$region0: #{tpu_custom_call.1}
  #allocation0 [shape = 'u32[]', space=smem, size = 0x4, offset = 0x4, fixed_abs, tag = 'smem constant byte address 0x4 - core index']
  #allocation1 [shape = 'u32[144,128]{1,0:T(1,128)}', space=vmem, size = 0x12000, scoped, tag = 'internal scratch']
  %s0 = inlined_call_operand.hbm [shape: f32[80], index: 0, kind: input, shape index: {}]
  %s1 = inlined_call_operand.hbm [shape: f32[2,4,4,128], index: 1, kind: input, shape index: {}]
  %s2 = inlined_call_operand.hbm [shape: f32[2,3,4,128], index: 2, kind: output, shape index: {}]
  %s3 = sld [smem:[#allocation0]]
  $region49: #{tpu_custom_call.1} parent=0
    _
  %s5 = ssub.s32 1, %s3
  %s6 = scalar_select 0, %s5, %s3
  $region1: #{tpu_custom_call.1} parent=0
    #allocation2 [shape = 'u8[512]{0}', space=smem, size = 0x200, scoped, tag = 'input window, operand 0, single buffered']
    #allocation3 [shape = 's32[2]{0}', space=sflag, size = 0x8, scoped, tag = 'scoped memory for tpu_custom_call.1']
    #allocation4 [shape = 's32[2]{0}', space=sflag, size = 0x8, scoped, tag = 'scoped memory for tpu_custom_call.1']
    #allocation5 [shape = 's32[2]{0}', space=sflag, size = 0x8, scoped, tag = 'scoped memory for tpu_custom_call.1']
    #allocation6 [shape = 'u8[16384]{0}', space=vmem, size = 0x4000, scoped, tag = 'input window, operand 1']
    #allocation7 [shape = 'u8[12288]{0}', space=vmem, size = 0x3000, scoped, tag = 'output window, operand 0']
    %7 = vsyncpa [#allocation5], 0
    %8 = vsyncpa [#allocation3], 0
    %s9 = scalar_lea.sflag [#allocation3], 1
    %10 = vsyncpa %s9, 0
    %11 = vsyncpa [#allocation4], 0
    %s12 = scalar_lea.sflag [#allocation4], 1
    %13 = vsyncpa %s12, 0
    loop: start=0, step=1, limit=4
    $region2: #{tpu_custom_call.1} parent=1 // loop_pre_header
      _
    $region3: #{tpu_custom_call.1} parent=1 // loop_header
      %s15 = sphi 0, %s19
      %p16 = scmp.ge.s32.totalorder %s15, 4
      %s22 = sphi 0, %s34
      %s23 = sphi 0, %s30
      %s24 = sphi 0, %s22
      %s25 = sphi 0, %s23
      %s26 = sphi 0, %s24
      %s27 = sphi 0, %s25
      %s35 = sphi 0, %s35
      %s37 = sphi 0, %s35
      %s38 = sphi 0, %s37
      %s52 = sphi 0, %s38
      %s60 = sphi 0, %s62
      %s63 = sphi 0, %s60
      %s64 = sphi 0, %s63
      %s80 = sphi 0, %s64
      %s88 = sphi 0, %s90
      %s91 = sphi 0, %s88
      %s92 = sphi 0, %s91
      %s108 = sphi 0, %s92
    $region4: #{tpu_custom_call.1} parent=1 // loop_header_branch
      %18 = sbr.rel (%p16) target = $region8
    $region5: #{tpu_custom_call.1} parent=1 // loop_body
      %s20 = ssub.s32 %s15, 1
      %s21 = ssub.s32 %s15, 2
      %s28 = sadd.s32 1, %s23
      %p29 = scmp.ge.s32.totalorder %s28, 1
      %s30 = scalar_select %p29, 0, %s28
      %s31 = sadd.s32 1, %s22
      %s32 = scalar_select %p29, %s31, %s22
      %p33 = scmp.ge.s32.totalorder %s32, 2
      %s34 = scalar_select %p33, 0, %s32
      %s36 = sadd.s32 %s35, 1
      %p39 = scmp.eq.s32.totalorder %s15, 1
      %p40 = scmp.ne.s32.totalorder %s35, %s37
      %p41 = scmp.eq.s32.totalorder %s15, 0
      %p42 = por %p40, %p41
      %p43 = scmp.ne.s32.totalorder %s35, %s37
      %p44 = scmp.eq.s32.totalorder %s20, 1
      %p45 = por %p43, %p44
      %p46 = scmp.ne.s32.totalorder %s37, %s38
      %p47 = scmp.eq.s32.totalorder %s20, 0
      %p48 = por %p46, %p47
      %p49 = scmp.ne.s32.totalorder %s37, %s38
      %p50 = scmp.eq.s32.totalorder %s21, 1
      %p51 = por %p49, %p50
      %p53 = scmp.ne.s32.totalorder %s38, %s52
      %p54 = scmp.eq.s32.totalorder %s21, 0
      %p55 = por %p53, %p54
      %s56 = ssub.s32 %s22, %s34
      %s57 = ssub.s32 %s23, %s30
      %s58 = sor.u32 %s56, %s57
      %p59 = scmp.eq.s32.totalorder %s58, 0
      %s61 = sadd.s32 %s60, 1
      %s62 = scalar_select %p59, %s60, %s61
      %p65 = pneg %p59
      %p66 = scmp.eq.s32.totalorder %s15, 1
      %p67 = por %p65, %p66
      %p68 = scmp.ne.s32.totalorder %s60, %s63
      %p69 = scmp.eq.s32.totalorder %s15, 0
      %p70 = por %p68, %p69
      %p71 = scmp.ne.s32.totalorder %s60, %s63
      %p72 = scmp.eq.s32.totalorder %s20, 1
      %p73 = por %p71, %p72
      %p74 = scmp.ne.s32.totalorder %s63, %s64
      %p75 = scmp.eq.s32.totalorder %s20, 0
      %p76 = por %p74, %p75
      %p77 = scmp.ne.s32.totalorder %s63, %s64
      %p78 = scmp.eq.s32.totalorder %s21, 1
      %p79 = por %p77, %p78
      %p81 = scmp.ne.s32.totalorder %s64, %s80
      %p82 = scmp.eq.s32.totalorder %s21, 0
      %p83 = por %p81, %p82
      %s84 = ssub.s32 %s22, %s34
      %s85 = ssub.s32 %s23, %s30
      %s86 = sor.u32 %s84, %s85
      %p87 = scmp.eq.s32.totalorder %s86, 0
      %s89 = sadd.s32 %s88, 1
      %s90 = scalar_select %p87, %s88, %s89
      %p93 = pneg %p87
      %p94 = scmp.eq.s32.totalorder %s15, 1
      %p95 = por %p93, %p94
      %p96 = scmp.ne.s32.totalorder %s88, %s91
      %p97 = scmp.eq.s32.totalorder %s15, 0
      %p98 = por %p96, %p97
      %p99 = scmp.ne.s32.totalorder %s88, %s91
      %p100 = scmp.eq.s32.totalorder %s20, 1
      %p101 = por %p99, %p100
      %p102 = scmp.ne.s32.totalorder %s91, %s92
      %p103 = scmp.eq.s32.totalorder %s20, 0
      %p104 = por %p102, %p103
      %p105 = scmp.ne.s32.totalorder %s91, %s92
      %p106 = scmp.eq.s32.totalorder %s21, 1
      %p107 = por %p105, %p106
      %p109 = scmp.ne.s32.totalorder %s92, %s108
      %p110 = scmp.eq.s32.totalorder %s21, 0
      %p111 = por %p109, %p110
      %p112 = scmp.le.s32.totalorder 1, %s15
      %p113 = scmp.lt.s32.totalorder %s15, 3
      %p114 = pnand %p112, %p113
      %p115 = pneg %p114
      // Predicated region
      $region9: #{tpu_custom_call.1} parent=5 // pred_check
        _
      $region10: #{tpu_custom_call.1} parent=5 // pred_check_branch
        %117 = sbr.rel (%p114) target = $region12
      $region11: #{tpu_custom_call.1} parent=5 // pred_region
        %s118 = ssub.s32 %s15, 1
        // Predicated region
        $region13: #{tpu_custom_call.1} parent=11 // pred_check
          %p119 = pneg %p48
        $region14: #{tpu_custom_call.1} parent=11 // pred_check_branch
          %121 = sbr.rel (%p119) target = $region16
        $region15: #{tpu_custom_call.1} parent=11 // pred_region
          %s123 = ssub.s32 16, 16
          %124 = vsyncadd [#allocation5], %s123
          %127 = dma.hbm_to_smem %s0, 16, [#allocation2], [#allocation5]
        $region16: #{tpu_custom_call.1} parent=11 // pred_fallthru
          _
      $region12: #{tpu_custom_call.1} parent=5 // pred_fallthru
        _
      %p128 = scmp.lt.s32.totalorder %s15, 2
      // Predicated region
      $region17: #{tpu_custom_call.1} parent=5 // pred_check
        %p129 = pneg %p128
      $region18: #{tpu_custom_call.1} parent=5 // pred_check_branch
        %131 = sbr.rel (%p129) target = $region20
      $region19: #{tpu_custom_call.1} parent=5 // pred_region
        // Predicated region
        $region21: #{tpu_custom_call.1} parent=19 // pred_check
          %p132 = pneg %p70
        $region22: #{tpu_custom_call.1} parent=19 // pred_check_branch
          %134 = sbr.rel (%p132) target = $region24
        $region23: #{tpu_custom_call.1} parent=19 // pred_region
          %s135 = sand.u32 %s60, 1
          %s136 = scalar_lea.sflag [#allocation3], %s135
          %s137 = sand.u32 %s60, 1
          %s138 = smul.addr %s137, 16
          %s139 = scalar_lea.vmem [#allocation6], %s138
          %s141 = ssub.s32 256, 256
          %142 = vsyncadd %s136, %s141
          %s143 = smul.addr %s22, 4
          %s144 = sadd.s32 %s23, %s143
          %s145 = smul.addr %s144, 64
          %s146 = scalar_lea.hbm %s1, %s145
          %s147 = sshll.u32 %s139, 4
          %s148 = int_to_ptr.vmem [resolvable:$true] %s147
          %153 = dma.hbm_to_vmem [thread:$0]  %s146, 256, %s148, %s136, 64, 64, 4
        $region24: #{tpu_custom_call.1} parent=19 // pred_fallthru
          _
      $region20: #{tpu_custom_call.1} parent=5 // pred_fallthru
        _
      %p154 = scmp.le.s32.totalorder 1, %s15
      %p155 = scmp.lt.s32.totalorder %s15, 3
      %p156 = pnand %p154, %p155
      %p157 = pneg %p156
      // Predicated region
      $region25: #{tpu_custom_call.1} parent=5 // pred_check
        _
      $region26: #{tpu_custom_call.1} parent=5 // pred_check_branch
        %159 = sbr.rel (%p156) target = $region28
      $region27: #{tpu_custom_call.1} parent=5 // pred_region
        %s160 = ssub.s32 %s15, 1
        // Predicated region
        $region29: #{tpu_custom_call.1} parent=27 // pred_check
          %p161 = pneg %p48
        $region30: #{tpu_custom_call.1} parent=27 // pred_check_branch
          %163 = sbr.rel (%p161) target = $region32
        $region31: #{tpu_custom_call.1} parent=27 // pred_region
          %164 = dma.done [#allocation5], 16
        $region32: #{tpu_custom_call.1} parent=27 // pred_fallthru
          _
        %s165 = sand.u32 %s63, 1
        %s166 = scalar_lea.sflag [#allocation3], %s165
        %s167 = sand.u32 %s63, 1
        %s168 = smul.addr %s167, 16
        %s169 = scalar_lea.vmem [#allocation6], %s168
        // Predicated region
        $region33: #{tpu_custom_call.1} parent=27 // pred_check
          %p170 = pneg %p76
        $region34: #{tpu_custom_call.1} parent=27 // pred_check_branch
          %172 = sbr.rel (%p170) target = $region36
        $region35: #{tpu_custom_call.1} parent=27 // pred_region
          %173 = dma.done %s166, 256
        $region36: #{tpu_custom_call.1} parent=27 // pred_fallthru
          _
        %174 = sfence
        %p175 = pneg %p48
        %p176 = pneg %p45
        %s177 = sand.u32 %s63, 1
        %s178 = scalar_lea.sflag [#allocation3], %s177
        %s179 = sand.u32 %s63, 1
        %s180 = smul.addr %s179, 16
        %s181 = scalar_lea.vmem [#allocation6], %s180
        %p182 = pneg %p76
        %p183 = pneg %p73
        %p184 = pneg %p104
        %p185 = pneg %p101
        %s186 = sand.u32 %s91, 1
        %s187 = scalar_lea.sflag [#allocation4], %s186
        %s188 = sand.u32 %s91, 1
        %s189 = smul.addr %s188, 12
        %s190 = scalar_lea.vmem [#allocation7], %s189
        %s191 = sld [smem:[#allocation2]]
        %s192 = sld [smem:[#allocation2 + $0x1]]
        %s193 = sld [smem:[#allocation2 + $0x2]]
        %s194 = sld [smem:[#allocation2 + $0x3]]
        %s195 = sld [smem:[#allocation2 + $0x4]]
        %s196 = sld [smem:[#allocation2 + $0x5]]
        %s197 = sld [smem:[#allocation2 + $0x6]]
        %s198 = sld [smem:[#allocation2 + $0x7]]
        %s199 = sld [smem:[#allocation2 + $0x8]]
        %s200 = sld [smem:[#allocation2 + $0x9]]
        %s201 = sld [smem:[#allocation2 + $0xa]]
        %s202 = sld [smem:[#allocation2 + $0xb]]
        %s203 = sld [smem:[#allocation2 + $0xc]]
        %s204 = sld [smem:[#allocation2 + $0xd]]
        %s205 = sld [smem:[#allocation2 + $0xe]]
        %s206 = sld [smem:[#allocation2 + $0xf]]
        %s207 = sld [smem:[#allocation2 + $0x10]]
        %s208 = sld [smem:[#allocation2 + $0x11]]
        %s209 = sld [smem:[#allocation2 + $0x12]]
        %s210 = sld [smem:[#allocation2 + $0x13]]
        %s211 = sld [smem:[#allocation2 + $0x14]]
        %s212 = sld [smem:[#allocation2 + $0x15]]
        %s213 = sld [smem:[#allocation2 + $0x16]]
        %s214 = sld [smem:[#allocation2 + $0x17]]
        %s215 = sld [smem:[#allocation2 + $0x18]]
        %s216 = sld [smem:[#allocation2 + $0x19]]
        %s217 = sld [smem:[#allocation2 + $0x1a]]
        %s218 = sld [smem:[#allocation2 + $0x1b]]
        %s219 = sld [smem:[#allocation2 + $0x1c]]
        %s220 = sld [smem:[#allocation2 + $0x1d]]
        %s221 = sld [smem:[#allocation2 + $0x1e]]
        %s222 = sld [smem:[#allocation2 + $0x1f]]
        %s223 = sld [smem:[#allocation2 + $0x20]]
        %s224 = sld [smem:[#allocation2 + $0x21]]
        %s225 = sld [smem:[#allocation2 + $0x22]]
        %s226 = sld [smem:[#allocation2 + $0x23]]
        %s227 = sld [smem:[#allocation2 + $0x24]]
        %s228 = sld [smem:[#allocation2 + $0x25]]
        %s229 = sld [smem:[#allocation2 + $0x26]]
        %s230 = sld [smem:[#allocation2 + $0x27]]
        %s231 = sld [smem:[#allocation2 + $0x28]]
        %s232 = sld [smem:[#allocation2 + $0x29]]
        %s233 = sld [smem:[#allocation2 + $0x2a]]
        %s234 = sld [smem:[#allocation2 + $0x2b]]
        %s235 = sld [smem:[#allocation2 + $0x2c]]
        %s236 = sld [smem:[#allocation2 + $0x2d]]
        %s237 = sld [smem:[#allocation2 + $0x2e]]
        %s238 = sld [smem:[#allocation2 + $0x2f]]
        %s239 = sld [smem:[#allocation2 + $0x30]]
        %s240 = sld [smem:[#allocation2 + $0x31]]
        %s241 = sld [smem:[#allocation2 + $0x32]]
        %s242 = sld [smem:[#allocation2 + $0x33]]
        %s243 = sld [smem:[#allocation2 + $0x34]]
        %s244 = sld [smem:[#allocation2 + $0x35]]
        %s245 = sld [smem:[#allocation2 + $0x36]]
        %s246 = sld [smem:[#allocation2 + $0x37]]
        %s247 = sld [smem:[#allocation2 + $0x38]]
        %s248 = sld [smem:[#allocation2 + $0x39]]
        %s249 = sld [smem:[#allocation2 + $0x3a]]
        %s250 = sld [smem:[#allocation2 + $0x3b]]
        %s251 = sld [smem:[#allocation2 + $0x3c]]
        %s252 = sld [smem:[#allocation2 + $0x3d]]
        %s253 = sld [smem:[#allocation2 + $0x3e]]
        %s254 = sld [smem:[#allocation2 + $0x3f]]
        %s255 = sld [smem:[#allocation2 + $0x40]]
        %s256 = sld [smem:[#allocation2 + $0x41]]
        %s257 = sld [smem:[#allocation2 + $0x42]]
        %s258 = sld [smem:[#allocation2 + $0x43]]
        %s259 = sld [smem:[#allocation2 + $0x44]]
        %s260 = sld [smem:[#allocation2 + $0x45]]
        %s261 = sld [smem:[#allocation2 + $0x46]]
        %s262 = sld [smem:[#allocation2 + $0x47]]
        %s263 = sld [smem:[#allocation2 + $0x48]]
        %s264 = sld [smem:[#allocation2 + $0x49]]
        %s265 = sld [smem:[#allocation2 + $0x4a]]
        %s266 = sld [smem:[#allocation2 + $0x4b]]
        %s267 = sld [smem:[#allocation2 + $0x4c]]
        %s268 = sld [smem:[#allocation2 + $0x4d]]
        %s269 = sld [smem:[#allocation2 + $0x4e]]
        %s270 = sld [smem:[#allocation2 + $0x4f]]
        %v271 = vld [vmem:[%s169] sm:$0xf]
        %s272 = sadd.s32 0, 4
        %s273 = scalar_lea.vmem %s169, %s272 [#allocation6]
        %v274 = vld [vmem:[%s273] sm:$0xf]
        %s275 = sadd.s32 0, 8
        %s276 = scalar_lea.vmem %s169, %s275 [#allocation6]
        %v277 = vld [vmem:[%s276] sm:$0xf]
        %s278 = sadd.s32 0, 12
        %s279 = scalar_lea.vmem %s169, %s278 [#allocation6]
        %v280 = vld [vmem:[%s279] sm:$0xf]
        %v281 = vstv %s191
        %v282 = vsub.f32 %v271, %v281
        %v283 = vmul.f32 %v282, %v282
        %v284 = vstv %s192
        %v285 = vsub.f32 %v274, %v284
        %v286 = vmul.f32 %v285, %v285
        %v287 = vstv %s193
        %v288 = vsub.f32 %v277, %v287
        %v289 = vmul.f32 %v288, %v288
        %v290 = vstv %s194
        %v291 = vsub.f32 %v280, %v290
        %v292 = vmul.f32 %v291, %v291
        %v293 = vadd.f32 %v283, %v286
        %v294 = vadd.f32 %v289, %v292
        %v295 = vadd.f32 %v293, %v294
        %v296 = vstv %s251
        %v297 = vmul.f32 %v296, %v295
        %v298 = vstv %s261
        %v299 = vsub.f32 %v298, %v297
        %v300 = vmul.f32 %v299, 1.442695
        %v301 = vpow.pop %v300
        %v302 = vsub.f32 1.0, %v301
        %v303 = vstv %s231
        %v304 = vmul.f32 %v301, %v303
        %v305 = vadd.f32 %v302, %v304
        %v306 = vstv %s232
        %v307 = vmul.f32 %v301, %v306
        %v308 = vadd.f32 %v302, %v307
        %v309 = vstv %s195
        %v310 = vsub.f32 %v271, %v309
        %v311 = vmul.f32 %v310, %v310
        %v312 = vstv %s196
        %v313 = vsub.f32 %v274, %v312
        %v314 = vmul.f32 %v313, %v313
        %v315 = vstv %s197
        %v316 = vsub.f32 %v277, %v315
        %v317 = vmul.f32 %v316, %v316
        %v318 = vstv %s198
        %v319 = vsub.f32 %v280, %v318
        %v320 = vmul.f32 %v319, %v319
        %v321 = vadd.f32 %v311, %v314
        %v322 = vadd.f32 %v317, %v320
        %v323 = vadd.f32 %v321, %v322
        %v324 = vstv %s252
        %v325 = vmul.f32 %v324, %v323
        %v326 = vstv %s262
        %v327 = vsub.f32 %v326, %v325
        %v328 = vmul.f32 %v327, 1.442695
        %v329 = vpow.pop %v328
        %v330 = vsub.f32 1.0, %v329
        %v331 = vmul.f32 %v302, %v330
        %v332 = vstv %s233
        %v333 = vmul.f32 %v329, %v332
        %v334 = vadd.f32 %v330, %v333
        %v335 = vmul.f32 %v305, %v334
        %v336 = vstv %s234
        %v337 = vmul.f32 %v329, %v336
        %v338 = vadd.f32 %v330, %v337
        %v339 = vmul.f32 %v308, %v338
        %v340 = vstv %s199
        %v341 = vsub.f32 %v271, %v340
        %v342 = vmul.f32 %v341, %v341
        %v343 = vstv %s200
        %v344 = vsub.f32 %v274, %v343
        %v345 = vmul.f32 %v344, %v344
        %v346 = vstv %s201
        %v347 = vsub.f32 %v277, %v346
        %v348 = vmul.f32 %v347, %v347
        %v349 = vstv %s202
        %v350 = vsub.f32 %v280, %v349
        %v351 = vmul.f32 %v350, %v350
        %v352 = vadd.f32 %v342, %v345
        %v353 = vadd.f32 %v348, %v351
        %v354 = vadd.f32 %v352, %v353
        %v355 = vstv %s253
        %v356 = vmul.f32 %v355, %v354
        %v357 = vstv %s263
        %v358 = vsub.f32 %v357, %v356
        %v359 = vmul.f32 %v358, 1.442695
        %v360 = vpow.pop %v359
        %v361 = vsub.f32 1.0, %v360
        %v362 = vmul.f32 %v331, %v361
        %v363 = vstv %s235
        %v364 = vmul.f32 %v360, %v363
        %v365 = vadd.f32 %v361, %v364
        %v366 = vmul.f32 %v335, %v365
        %v367 = vstv %s236
        %v368 = vmul.f32 %v360, %v367
        %v369 = vadd.f32 %v361, %v368
        %v370 = vmul.f32 %v339, %v369
        %v371 = vstv %s203
        %v372 = vsub.f32 %v271, %v371
        %v373 = vmul.f32 %v372, %v372
        %v374 = vstv %s204
        %v375 = vsub.f32 %v274, %v374
        %v376 = vmul.f32 %v375, %v375
        %v377 = vstv %s205
        %v378 = vsub.f32 %v277, %v377
        %v379 = vmul.f32 %v378, %v378
        %v380 = vstv %s206
        %v381 = vsub.f32 %v280, %v380
        %v382 = vmul.f32 %v381, %v381
        %v383 = vadd.f32 %v373, %v376
        %v384 = vadd.f32 %v379, %v382
        %v385 = vadd.f32 %v383, %v384
        %v386 = vstv %s254
        %v387 = vmul.f32 %v386, %v385
        %v388 = vstv %s264
        %v389 = vsub.f32 %v388, %v387
        %v390 = vmul.f32 %v389, 1.442695
        %v391 = vpow.pop %v390
        %v392 = vsub.f32 1.0, %v391
        %v393 = vmul.f32 %v362, %v392
        %v394 = vstv %s237
        %v395 = vmul.f32 %v391, %v394
        %v396 = vadd.f32 %v392, %v395
        %v397 = vmul.f32 %v366, %v396
        %v398 = vstv %s238
        %v399 = vmul.f32 %v391, %v398
        %v400 = vadd.f32 %v392, %v399
        %v401 = vmul.f32 %v370, %v400
        %v402 = vstv %s207
        %v403 = vsub.f32 %v271, %v402
        %v404 = vmul.f32 %v403, %v403
        %v405 = vstv %s208
        %v406 = vsub.f32 %v274, %v405
        %v407 = vmul.f32 %v406, %v406
        %v408 = vstv %s209
        %v409 = vsub.f32 %v277, %v408
        %v410 = vmul.f32 %v409, %v409
        %v411 = vstv %s210
        %v412 = vsub.f32 %v280, %v411
        %v413 = vmul.f32 %v412, %v412
        %v414 = vadd.f32 %v404, %v407
        %v415 = vadd.f32 %v410, %v413
        %v416 = vadd.f32 %v414, %v415
        %v417 = vstv %s255
        %v418 = vmul.f32 %v417, %v416
        %v419 = vstv %s265
        %v420 = vsub.f32 %v419, %v418
        %v421 = vmul.f32 %v420, 1.442695
        %v422 = vpow.pop %v421
        %v423 = vsub.f32 1.0, %v422
        %v424 = vmul.f32 %v393, %v423
        %v425 = vstv %s239
        %v426 = vmul.f32 %v422, %v425
        %v427 = vadd.f32 %v423, %v426
        %v428 = vmul.f32 %v397, %v427
        %v429 = vstv %s240
        %v430 = vmul.f32 %v422, %v429
        %v431 = vadd.f32 %v423, %v430
        %v432 = vmul.f32 %v401, %v431
        %v433 = vstv %s211
        %v434 = vsub.f32 %v271, %v433
        %v435 = vmul.f32 %v434, %v434
        %v436 = vstv %s212
        %v437 = vsub.f32 %v274, %v436
        %v438 = vmul.f32 %v437, %v437
        %v439 = vstv %s213
        %v440 = vsub.f32 %v277, %v439
        %v441 = vmul.f32 %v440, %v440
        %v442 = vstv %s214
        %v443 = vsub.f32 %v280, %v442
        %v444 = vmul.f32 %v443, %v443
        %v445 = vadd.f32 %v435, %v438
        %v446 = vadd.f32 %v441, %v444
        %v447 = vadd.f32 %v445, %v446
        %v448 = vstv %s256
        %v449 = vmul.f32 %v448, %v447
        %v450 = vstv %s266
        %v451 = vsub.f32 %v450, %v449
        %v452 = vmul.f32 %v451, 1.442695
        %v453 = vpow.pop %v452
        %v454 = vsub.f32 1.0, %v453
        %v455 = vmul.f32 %v424, %v454
        %v456 = vstv %s241
        %v457 = vmul.f32 %v453, %v456
        %v458 = vadd.f32 %v454, %v457
        %v459 = vmul.f32 %v428, %v458
        %v460 = vstv %s242
        %v461 = vmul.f32 %v453, %v460
        %v462 = vadd.f32 %v454, %v461
        %v463 = vmul.f32 %v432, %v462
        %v464 = vstv %s215
        %v465 = vsub.f32 %v271, %v464
        %v466 = vmul.f32 %v465, %v465
        %v467 = vstv %s216
        %v468 = vsub.f32 %v274, %v467
        %v469 = vmul.f32 %v468, %v468
        %v470 = vstv %s217
        %v471 = vsub.f32 %v277, %v470
        %v472 = vmul.f32 %v471, %v471
        %v473 = vstv %s218
        %v474 = vsub.f32 %v280, %v473
        %v475 = vmul.f32 %v474, %v474
        %v476 = vadd.f32 %v466, %v469
        %v477 = vadd.f32 %v472, %v475
        %v478 = vadd.f32 %v476, %v477
        %v479 = vstv %s257
        %v480 = vmul.f32 %v479, %v478
        %v481 = vstv %s267
        %v482 = vsub.f32 %v481, %v480
        %v483 = vmul.f32 %v482, 1.442695
        %v484 = vpow.pop %v483
        %v485 = vsub.f32 1.0, %v484
        %v486 = vmul.f32 %v455, %v485
        %v487 = vstv %s243
        %v488 = vmul.f32 %v484, %v487
        %v489 = vadd.f32 %v485, %v488
        %v490 = vmul.f32 %v459, %v489
        %v491 = vstv %s244
        %v492 = vmul.f32 %v484, %v491
        %v493 = vadd.f32 %v485, %v492
        %v494 = vmul.f32 %v463, %v493
        %v495 = vstv %s219
        %v496 = vsub.f32 %v271, %v495
        %v497 = vmul.f32 %v496, %v496
        %v498 = vstv %s220
        %v499 = vsub.f32 %v274, %v498
        %v500 = vmul.f32 %v499, %v499
        %v501 = vstv %s221
        %v502 = vsub.f32 %v277, %v501
        %v503 = vmul.f32 %v502, %v502
        %v504 = vstv %s222
        %v505 = vsub.f32 %v280, %v504
        %v506 = vmul.f32 %v505, %v505
        %v507 = vadd.f32 %v497, %v500
        %v508 = vadd.f32 %v503, %v506
        %v509 = vadd.f32 %v507, %v508
        %v510 = vstv %s258
        %v511 = vmul.f32 %v510, %v509
        %v512 = vstv %s268
        %v513 = vsub.f32 %v512, %v511
        %v514 = vmul.f32 %v513, 1.442695
        %v515 = vpow.pop %v514
        %v516 = vsub.f32 1.0, %v515
        %v517 = vmul.f32 %v486, %v516
        %v518 = vstv %s245
        %v519 = vmul.f32 %v515, %v518
        %v520 = vadd.f32 %v516, %v519
        %v521 = vmul.f32 %v490, %v520
        %v522 = vstv %s246
        %v523 = vmul.f32 %v515, %v522
        %v524 = vadd.f32 %v516, %v523
        %v525 = vmul.f32 %v494, %v524
        %v526 = vstv %s223
        %v527 = vsub.f32 %v271, %v526
        %v528 = vmul.f32 %v527, %v527
        %v529 = vstv %s224
        %v530 = vsub.f32 %v274, %v529
        %v531 = vmul.f32 %v530, %v530
        %v532 = vstv %s225
        %v533 = vsub.f32 %v277, %v532
        %v534 = vmul.f32 %v533, %v533
        %v535 = vstv %s226
        %v536 = vsub.f32 %v280, %v535
        %v537 = vmul.f32 %v536, %v536
        %v538 = vadd.f32 %v528, %v531
        %v539 = vadd.f32 %v534, %v537
        %v540 = vadd.f32 %v538, %v539
        %v541 = vstv %s259
        %v542 = vmul.f32 %v541, %v540
        %v543 = vstv %s269
        %v544 = vsub.f32 %v543, %v542
        %v545 = vmul.f32 %v544, 1.442695
        %v546 = vpow.pop %v545
        %v547 = vsub.f32 1.0, %v546
        %v548 = vmul.f32 %v517, %v547
        %v549 = vstv %s247
        %v550 = vmul.f32 %v546, %v549
        %v551 = vadd.f32 %v547, %v550
        %v552 = vmul.f32 %v521, %v551
        %v553 = vstv %s248
        %v554 = vmul.f32 %v546, %v553
        %v555 = vadd.f32 %v547, %v554
        %v556 = vmul.f32 %v525, %v555
        %v557 = vstv %s227
        %v558 = vsub.f32 %v271, %v557
        %v559 = vmul.f32 %v558, %v558
        %v560 = vstv %s228
        %v561 = vsub.f32 %v274, %v560
        %v562 = vmul.f32 %v561, %v561
        %v563 = vstv %s229
        %v564 = vsub.f32 %v277, %v563
        %v565 = vmul.f32 %v564, %v564
        %v566 = vstv %s230
        %v567 = vsub.f32 %v280, %v566
        %v568 = vmul.f32 %v567, %v567
        %v569 = vadd.f32 %v559, %v562
        %v570 = vadd.f32 %v565, %v568
        %v571 = vadd.f32 %v569, %v570
        %v572 = vstv %s260
        %v573 = vmul.f32 %v572, %v571
        %v574 = vstv %s270
        %v575 = vsub.f32 %v574, %v573
        %v576 = vmul.f32 %v575, 1.442695
        %v577 = vpow.pop %v576
        %v578 = vsub.f32 1.0, %v577
        %v579 = vmul.f32 %v548, %v578
        %v580 = vstv %s249
        %v581 = vmul.f32 %v577, %v580
        %v582 = vadd.f32 %v578, %v581
        %v583 = vmul.f32 %v552, %v582
        %v584 = vstv %s250
        %v585 = vmul.f32 %v577, %v584
        %v586 = vadd.f32 %v578, %v585
        %v587 = vmul.f32 %v556, %v586
        %v588 = vsub.f32 %v583, %v579
        %v589 = vsub.f32 %v587, %v579
        %v590 = vadd.f32 %v579, %v588
        %v591 = vadd.f32 %v590, %v589
        %v592 = vrcp.pop %v591
        %v593 = vmul.f32 %v588, %v592
        %594 = vst [vmem:[%s190] sm:$0xf] %v593
        %v595 = vmul.f32 %v589, %v592
        %s596 = scalar_lea.vmem %s190, %s272 [#allocation7]
        %597 = vst [vmem:[%s596] sm:$0xf] %v595
        %v598 = vmul.f32 %v579, %v592
        %s599 = scalar_lea.vmem %s190, %s275 [#allocation7]
        %600 = vst [vmem:[%s599] sm:$0xf] %v598
        %s601 = sand.u32 %s91, 1
        %s602 = scalar_lea.sflag [#allocation4], %s601
        %s603 = sand.u32 %s91, 1
        %s604 = smul.addr %s603, 12
        %s605 = scalar_lea.vmem [#allocation7], %s604
        // Predicated region
        $region37: #{tpu_custom_call.1} parent=27 // pred_check
          %p606 = pneg %p101
        $region38: #{tpu_custom_call.1} parent=27 // pred_check_branch
          %608 = sbr.rel (%p606) target = $region40
        $region39: #{tpu_custom_call.1} parent=27 // pred_region
          %s610 = ssub.s32 192, 192
          %611 = vsyncadd %s602, %s610
          %s612 = smul.addr %s24, 3
          %s613 = sadd.s32 %s25, %s612
          %s614 = smul.addr %s613, 64
          %s615 = scalar_lea.hbm %s2, %s614
          %s616 = sshll.u32 %s605, 4
          %s617 = int_to_ptr.vmem [resolvable:$true] %s616
          %622 = dma.vmem_to_hbm [thread:$0]  %s617, 192, %s615, %s602, 64, 64, 4
        $region40: #{tpu_custom_call.1} parent=27 // pred_fallthru
          _
      $region28: #{tpu_custom_call.1} parent=5 // pred_fallthru
        _
      %p623 = scmp.le.s32.totalorder 2, %s15
      // Predicated region
      $region41: #{tpu_custom_call.1} parent=5 // pred_check
        %p624 = pneg %p623
      $region42: #{tpu_custom_call.1} parent=5 // pred_check_branch
        %626 = sbr.rel (%p624) target = $region44
      $region43: #{tpu_custom_call.1} parent=5 // pred_region
        %s627 = ssub.s32 %s15, 2
        // Predicated region
        $region45: #{tpu_custom_call.1} parent=43 // pred_check
          %p628 = pneg %p107
        $region46: #{tpu_custom_call.1} parent=43 // pred_check_branch
          %630 = sbr.rel (%p628) target = $region48
        $region47: #{tpu_custom_call.1} parent=43 // pred_region
          %s631 = sand.u32 %s92, 1
          %s632 = scalar_lea.sflag [#allocation4], %s631
          %s633 = sand.u32 %s92, 1
          %s634 = smul.addr %s633, 12
          %s635 = scalar_lea.vmem [#allocation7], %s634
          %636 = dma.done %s632, 192
        $region48: #{tpu_custom_call.1} parent=43 // pred_fallthru
          _
      $region44: #{tpu_custom_call.1} parent=5 // pred_fallthru
        _
    $region6: #{tpu_custom_call.1} parent=1 // loop_footer
      %s19 = sadd.s32 1, %s15
    $region7: #{tpu_custom_call.1} parent=1 // loop_footer_branch
      %14 = sbr.rel target = $region3
    $region8: #{tpu_custom_call.1} parent=1 // loop_exit
      _
    %637 = vsyncpa [#allocation3], 1
    %s638 = scalar_lea.sflag [#allocation3], 1
    %639 = vsyncpa %s638, 1
    %640 = vsyncpa [#allocation4], 1
    %s641 = scalar_lea.sflag [#allocation4], 1
    %642 = vsyncpa %s641, 1
    %643 = vsyncpa [#allocation5], 1
    %s644 = scalar_lea.sflag [#allocation5], 1
    %645 = vsyncpa %s644, 1

</llo_original>
